<compile_context>
chip_gen: v7x
topology: tpu7x:2x2x1
jax: 0.10.0
libtpu: 0.0.40
codegen_flags: <defaults>
</compile_context>

<pallas_src>
import jax
import jax.numpy as jnp
import numpy as np
from jax.experimental import pallas as pl
from jax.experimental.pallas import tpu as pltpu

# Small, module-consistent shapes.
N, H, W = 8, 8, 8
HW = H * W                         # 64 positions per image
R = N * HW                         # 512 flattened positions (lane dimension)
R_TILE = 256                       # lane-dense columns per grid step
GROUPS = R_TILE // 128             # 128-lane groups per tile (whole images each)
PLANES = 8
EXPANSION = 4
OUTC = PLANES * EXPANSION          # 32
INPLANES = OUTC                    # residual add requires inplanes == planes*4
SLAB_ROWS = 2 * PLANES + OUTC      # 48 rows: w1 | w2 | w3 (and b1 | b2 | b3)
MASK_ROWS = 16                     # 9 used, padded to a sublane multiple
EPS = 1e-5

assert 128 % HW == 0               # whole images per 128-lane group
assert R_TILE % 128 == 0 and R % R_TILE == 0


def bottleneck_kernel(x_ref, w_ref, b_ref, m_ref, o_ref):
    xt = x_ref[...]                                            # (Cin, RT) = (32, 256)

    # Unpack the packed parameter slabs with static ref slices (no compute).
    w1 = w_ref[0:PLANES, 0:INPLANES]                           # (8, 32)   BN1-scaled
    w2 = w_ref[PLANES:2 * PLANES, 0:9 * PLANES]                # (8, 72)   BN2-scaled
    w3 = w_ref[2 * PLANES:SLAB_ROWS, 0:PLANES]                 # (32, 8)   BN3-scaled
    b1 = b_ref[0:PLANES, :]                                    # (8, 1)
    b2 = b_ref[PLANES:2 * PLANES, :]                           # (8, 1)
    b3 = b_ref[2 * PLANES:SLAB_ROWS, :]                        # (32, 1)

    # conv1 (1x1) + bn1 + relu
    t1 = jnp.dot(w1, xt, preferred_element_type=jnp.float32)
    t1 = jnp.maximum(t1 + b1, 0.0)                             # (8, RT)

    # conv2 (3x3, stride=1, pad=1) as ONE im2col matmul.  Each 128-lane group
    # holds whole images, so a per-group lane roll + precomputed boundary mask
    # produces every (dy, dx) shifted window; out-of-image lanes are zeroed.
    def shift(t, s):
        parts = [pltpu.roll(t[:, g * 128:(g + 1) * 128], s, axis=1)
                 for g in range(GROUPS)]
        return parts[0] if GROUPS == 1 else jnp.concatenate(parts, axis=1)

    wins = []
    k = 0
    for dy in (-1, 0, 1):
        for dx in (-1, 0, 1):
            if dy == 0 and dx == 0:
                wins.append(t1)                                # center tap: no shift, no mask
            else:
                off = dy * W + dx
                wins.append(shift(t1, (-off) % 128) * m_ref[k:k + 1, :])
            k += 1
    patch = jnp.concatenate(wins, axis=0)                      # (72, RT)
    t2 = jnp.dot(w2, patch, preferred_element_type=jnp.float32)
    t2 = jnp.maximum(t2 + b2, 0.0)                             # (8, RT)

    # conv3 (1x1) + bn3 + residual add + relu
    t3 = jnp.dot(w3, t2, preferred_element_type=jnp.float32)
    o_ref[...] = jnp.maximum(t3 + b3 + xt, 0.0)                # lane-dense unmasked store


def prepare_params(w1, w2, w3, s1, b1, s2, b2, s3, b3):
    """One-time (per model load) constant transform: fold BN scales into the
    conv weights, pack weights / biases into single slabs, build conv2 masks."""
    w1t = w1.T * s1[:, None]                                               # (P, Cin)
    w2f = jnp.transpose(w2, (3, 0, 1, 2)).reshape(PLANES, 9 * PLANES) * s2[:, None]
    w3t = w3.T * s3[:, None]                                               # (4P, P)

    wslab = jnp.zeros((SLAB_ROWS, 128), jnp.float32)
    wslab = wslab.at[0:PLANES, 0:INPLANES].set(w1t)
    wslab = wslab.at[PLANES:2 * PLANES, 0:9 * PLANES].set(w2f)
    wslab = wslab.at[2 * PLANES:SLAB_ROWS, 0:PLANES].set(w3t)

    bslab = jnp.concatenate([b1, b2, b3]).reshape(SLAB_ROWS, 1)

    # conv2 boundary masks: one row per (dy, dx) tap, per lane of an R tile.
    r = np.arange(R_TILE)
    p = r % HW
    hh, ww = p // W, p % W
    mask = np.zeros((MASK_ROWS, R_TILE), np.float32)
    k = 0
    for dy in (-1, 0, 1):
        for dx in (-1, 0, 1):
            mask[k] = ((hh + dy >= 0) & (hh + dy < H) &
                       (ww + dx >= 0) & (ww + dx < W)).astype(np.float32)
            k += 1
    return wslab, bslab, jnp.asarray(mask)


def bottleneck(x_cm, wslab, bslab, mask):
    """Channel-major bottleneck: x_cm is (INPLANES, N*H*W) with column index
    r = n*H*W + h*W + w; returns (OUTC, N*H*W) in the same layout (so stacked
    blocks need no per-block transposes)."""
    n_tiles = x_cm.shape[1] // R_TILE
    return pl.pallas_call(
        bottleneck_kernel,
        out_shape=jax.ShapeDtypeStruct((OUTC, x_cm.shape[1]), jnp.float32),
        grid=(n_tiles,),
        in_specs=[
            pl.BlockSpec((INPLANES, R_TILE), lambda r: (0, r)),     # revolving
            pl.BlockSpec((SLAB_ROWS, 128), lambda r: (0, 0)),       # resident
            pl.BlockSpec((SLAB_ROWS, 1), lambda r: (0, 0)),         # resident
            pl.BlockSpec((MASK_ROWS, R_TILE), lambda r: (0, 0)),    # resident
        ],
        out_specs=pl.BlockSpec((OUTC, R_TILE), lambda r: (0, r)),
        compiler_params=pltpu.CompilerParams(
            dimension_semantics=("parallel",)),
    )(x_cm, wslab, bslab, mask)


def reference(x, w1, w2, w3, s1, b1, s2, b2, s3, b3):
    """Plain-JAX reference (NHWC convs) for a correctness check."""
    def conv(a, w, pad):
        return jax.lax.conv_general_dilated(
            a, w, window_strides=(1, 1), padding=pad,
            dimension_numbers=("NHWC", "HWIO", "NHWC"))
    t = jnp.maximum(conv(x, w1[None, None], "VALID") * s1 + b1, 0.0)
    t = jnp.maximum(conv(t, w2, "SAME") * s2 + b2, 0.0)
    t = conv(t, w3[None, None], "VALID") * s3 + b3
    return jnp.maximum(t + x, 0.0)


def fold_bn(gamma, beta, mean, var):
    scale = gamma / jnp.sqrt(var + EPS)
    bias = beta - mean * scale
    return scale, bias


if __name__ == "__main__":
    key = jax.random.PRNGKey(0)
    ks = jax.random.split(key, 8)

    x = jax.random.normal(ks[0], (N, H, W, INPLANES), jnp.float32)

    w1 = jax.random.normal(ks[1], (INPLANES, PLANES), jnp.float32) * 0.1
    w2 = jax.random.normal(ks[2], (3, 3, PLANES, PLANES), jnp.float32) * 0.1
    w3 = jax.random.normal(ks[3], (PLANES, OUTC), jnp.float32) * 0.1

    def bn_params(k, c):
        k1, k2, k3, k4 = jax.random.split(k, 4)
        gamma = jax.random.uniform(k1, (c,), jnp.float32, 0.5, 1.5)
        beta = jax.random.normal(k2, (c,), jnp.float32) * 0.1
        mean = jax.random.normal(k3, (c,), jnp.float32) * 0.1
        var = jax.random.uniform(k4, (c,), jnp.float32, 0.5, 1.5)
        return fold_bn(gamma, beta, mean, var)

    s1, b1 = bn_params(ks[4], PLANES)
    s2, b2 = bn_params(ks[5], PLANES)
    s3, b3 = bn_params(ks[6], OUTC)

    # One-time parameter packing (model-load cost, not per-call).
    wslab, bslab, mask = prepare_params(w1, w2, w3, s1, b1, s2, b2, s3, b3)

    # Network-entry layout conversion (done once per network, not per block).
    x_cm = x.reshape(R, INPLANES).T                            # (Cin, R), lane-dense

    out_cm = bottleneck(x_cm, wslab, bslab, mask)
    out_cm = jax.block_until_ready(out_cm)

    out = out_cm.T.reshape(N, H, W, OUTC)                      # network-exit conversion
    ref = reference(x, w1, w2, w3, s1, b1, s2, b2, s3, b3)
    np.testing.assert_allclose(np.asarray(out), np.asarray(ref), atol=5e-4, rtol=5e-4)

    print("KERNEL_OK")
</pallas_src>

<mosaic_0001>
module attributes {stable_mosaic.version = 11 : i64} {
  func.func @bottleneck_kernel(%arg0: i32, %arg1: memref<32x256xf32, #tpu.memory_space<vmem>>, %arg2: memref<48x128xf32, #tpu.memory_space<vmem>>, %arg3: memref<48x1xf32, #tpu.memory_space<vmem>>, %arg4: memref<16x256xf32, #tpu.memory_space<vmem>>, %arg5: memref<32x256xf32, #tpu.memory_space<vmem>>) attributes {dimension_semantics = [#tpu.dimension_semantics<parallel>], iteration_bounds = array<i64: 2>, scalar_prefetch = 0 : i64, scratch_operands = 0 : i64, tpu.core_type = #tpu.core_type<tc>, window_params = [{transform_indices = @transform_0, window_bounds = array<i64: 32, 256>}, {pipeline_mode = #tpu.pipeline_mode<synchronous>, transform_indices = @transform_1, window_bounds = array<i64: 48, 128>}, {pipeline_mode = #tpu.pipeline_mode<synchronous>, transform_indices = @transform_2, window_bounds = array<i64: 48, 1>}, {pipeline_mode = #tpu.pipeline_mode<synchronous>, transform_indices = @transform_3, window_bounds = array<i64: 16, 256>}, {transform_indices = @transform_4, window_bounds = array<i64: 32, 256>}]} {
    %c0 = arith.constant 0 : index
    %c0_0 = arith.constant 0 : index
    %0 = vector.load %arg1[%c0, %c0_0] : memref<32x256xf32, #tpu.memory_space<vmem>>, vector<32x256xf32>
    %c0_1 = arith.constant 0 : index
    %c0_2 = arith.constant 0 : index
    %1 = vector.load %arg2[%c0_1, %c0_2] : memref<48x128xf32, #tpu.memory_space<vmem>>, vector<8x32xf32>
    %c8 = arith.constant 8 : index
    %c0_3 = arith.constant 0 : index
    %2 = vector.load %arg2[%c8, %c0_3] : memref<48x128xf32, #tpu.memory_space<vmem>>, vector<8x72xf32>
    %c16 = arith.constant 16 : index
    %c0_4 = arith.constant 0 : index
    %3 = vector.load %arg2[%c16, %c0_4] : memref<48x128xf32, #tpu.memory_space<vmem>>, vector<32x8xf32>
    %c0_5 = arith.constant 0 : index
    %c0_6 = arith.constant 0 : index
    %4 = vector.load %arg3[%c0_5, %c0_6] : memref<48x1xf32, #tpu.memory_space<vmem>>, vector<8x1xf32>
    %c8_7 = arith.constant 8 : index
    %c0_8 = arith.constant 0 : index
    %5 = vector.load %arg3[%c8_7, %c0_8] : memref<48x1xf32, #tpu.memory_space<vmem>>, vector<8x1xf32>
    %c16_9 = arith.constant 16 : index
    %c0_10 = arith.constant 0 : index
    %6 = vector.load %arg3[%c16_9, %c0_10] : memref<48x1xf32, #tpu.memory_space<vmem>>, vector<32x1xf32>
    %cst = arith.constant dense<0.000000e+00> : vector<8x256xf32>
    %7 = tpu.matmul %1, %0, %cst {dimension_numbers = #tpu.dot_dimension_numbers<[1], [0], [0], [1], [0, 0, 1, 1], [], []>} : vector<8x32xf32>, vector<32x256xf32>, vector<8x256xf32> -> vector<8x256xf32>
    %8 = vector.broadcast %4 : vector<8x1xf32> to vector<8x256xf32>
    %9 = arith.addf %7, %8 : vector<8x256xf32>
    %cst_11 = arith.constant 0.000000e+00 : f32
    %10 = vector.broadcast %cst_11 : f32 to vector<8x256xf32>
    %11 = arith.maximumf %9, %10 : vector<8x256xf32>
    %12 = vector.extract_strided_slice %11 {offsets = [0, 0], sizes = [8, 128], strides = [1, 1]} : vector<8x256xf32> to vector<8x128xf32>
    %c9_i32 = arith.constant 9 : i32
    %13 = tpu.dynamic_rotate %12 by %c9_i32 dim 1 : vector<8x128xf32>, i32 -> vector<8x128xf32>
    %14 = vector.extract_strided_slice %11 {offsets = [0, 128], sizes = [8, 128], strides = [1, 1]} : vector<8x256xf32> to vector<8x128xf32>
    %c9_i32_12 = arith.constant 9 : i32
    %15 = tpu.dynamic_rotate %14 by %c9_i32_12 dim 1 : vector<8x128xf32>, i32 -> vector<8x128xf32>
    %16 = tpu.concatenate %13, %15 in 1 : vector<8x128xf32>, vector<8x128xf32> -> vector<8x256xf32>
    %c0_13 = arith.constant 0 : index
    %c0_14 = arith.constant 0 : index
    %17 = vector.load %arg4[%c0_13, %c0_14] : memref<16x256xf32, #tpu.memory_space<vmem>>, vector<1x256xf32>
    %18 = vector.broadcast %17 : vector<1x256xf32> to vector<8x256xf32>
    %19 = arith.mulf %16, %18 : vector<8x256xf32>
    %20 = vector.extract_strided_slice %11 {offsets = [0, 0], sizes = [8, 128], strides = [1, 1]} : vector<8x256xf32> to vector<8x128xf32>
    %c8_i32 = arith.constant 8 : i32
    %21 = tpu.dynamic_rotate %20 by %c8_i32 dim 1 : vector<8x128xf32>, i32 -> vector<8x128xf32>
    %22 = vector.extract_strided_slice %11 {offsets = [0, 128], sizes = [8, 128], strides = [1, 1]} : vector<8x256xf32> to vector<8x128xf32>
    %c8_i32_15 = arith.constant 8 : i32
    %23 = tpu.dynamic_rotate %22 by %c8_i32_15 dim 1 : vector<8x128xf32>, i32 -> vector<8x128xf32>
    %24 = tpu.concatenate %21, %23 in 1 : vector<8x128xf32>, vector<8x128xf32> -> vector<8x256xf32>
    %c1 = arith.constant 1 : index
    %c0_16 = arith.constant 0 : index
    %25 = vector.load %arg4[%c1, %c0_16] : memref<16x256xf32, #tpu.memory_space<vmem>>, vector<1x256xf32>
    %26 = vector.broadcast %25 : vector<1x256xf32> to vector<8x256xf32>
    %27 = arith.mulf %24, %26 : vector<8x256xf32>
    %28 = vector.extract_strided_slice %11 {offsets = [0, 0], sizes = [8, 128], strides = [1, 1]} : vector<8x256xf32> to vector<8x128xf32>
    %c7_i32 = arith.constant 7 : i32
    %29 = tpu.dynamic_rotate %28 by %c7_i32 dim 1 : vector<8x128xf32>, i32 -> vector<8x128xf32>
    %30 = vector.extract_strided_slice %11 {offsets = [0, 128], sizes = [8, 128], strides = [1, 1]} : vector<8x256xf32> to vector<8x128xf32>
    %c7_i32_17 = arith.constant 7 : i32
    %31 = tpu.dynamic_rotate %30 by %c7_i32_17 dim 1 : vector<8x128xf32>, i32 -> vector<8x128xf32>
    %32 = tpu.concatenate %29, %31 in 1 : vector<8x128xf32>, vector<8x128xf32> -> vector<8x256xf32>
    %c2 = arith.constant 2 : index
    %c0_18 = arith.constant 0 : index
    %33 = vector.load %arg4[%c2, %c0_18] : memref<16x256xf32, #tpu.memory_space<vmem>>, vector<1x256xf32>
    %34 = vector.broadcast %33 : vector<1x256xf32> to vector<8x256xf32>
    %35 = arith.mulf %32, %34 : vector<8x256xf32>
    %36 = vector.extract_strided_slice %11 {offsets = [0, 0], sizes = [8, 128], strides = [1, 1]} : vector<8x256xf32> to vector<8x128xf32>
    %c1_i32 = arith.constant 1 : i32
    %37 = tpu.dynamic_rotate %36 by %c1_i32 dim 1 : vector<8x128xf32>, i32 -> vector<8x128xf32>
    %38 = vector.extract_strided_slice %11 {offsets = [0, 128], sizes = [8, 128], strides = [1, 1]} : vector<8x256xf32> to vector<8x128xf32>
    %c1_i32_19 = arith.constant 1 : i32
    %39 = tpu.dynamic_rotate %38 by %c1_i32_19 dim 1 : vector<8x128xf32>, i32 -> vector<8x128xf32>
    %40 = tpu.concatenate %37, %39 in 1 : vector<8x128xf32>, vector<8x128xf32> -> vector<8x256xf32>
    %c3 = arith.constant 3 : index
    %c0_20 = arith.constant 0 : index
    %41 = vector.load %arg4[%c3, %c0_20] : memref<16x256xf32, #tpu.memory_space<vmem>>, vector<1x256xf32>
    %42 = vector.broadcast %41 : vector<1x256xf32> to vector<8x256xf32>
    %43 = arith.mulf %40, %42 : vector<8x256xf32>
    %44 = vector.extract_strided_slice %11 {offsets = [0, 0], sizes = [8, 128], strides = [1, 1]} : vector<8x256xf32> to vector<8x128xf32>
    %c127_i32 = arith.constant 127 : i32
    %45 = tpu.dynamic_rotate %44 by %c127_i32 dim 1 : vector<8x128xf32>, i32 -> vector<8x128xf32>
    %46 = vector.extract_strided_slice %11 {offsets = [0, 128], sizes = [8, 128], strides = [1, 1]} : vector<8x256xf32> to vector<8x128xf32>
    %c127_i32_21 = arith.constant 127 : i32
    %47 = tpu.dynamic_rotate %46 by %c127_i32_21 dim 1 : vector<8x128xf32>, i32 -> vector<8x128xf32>
    %48 = tpu.concatenate %45, %47 in 1 : vector<8x128xf32>, vector<8x128xf32> -> vector<8x256xf32>
    %c5 = arith.constant 5 : index
    %c0_22 = arith.constant 0 : index
    %49 = vector.load %arg4[%c5, %c0_22] : memref<16x256xf32, #tpu.memory_space<vmem>>, vector<1x256xf32>
    %50 = vector.broadcast %49 : vector<1x256xf32> to vector<8x256xf32>
    %51 = arith.mulf %48, %50 : vector<8x256xf32>
    %52 = vector.extract_strided_slice %11 {offsets = [0, 0], sizes = [8, 128], strides = [1, 1]} : vector<8x256xf32> to vector<8x128xf32>
    %c121_i32 = arith.constant 121 : i32
    %53 = tpu.dynamic_rotate %52 by %c121_i32 dim 1 : vector<8x128xf32>, i32 -> vector<8x128xf32>
    %54 = vector.extract_strided_slice %11 {offsets = [0, 128], sizes = [8, 128], strides = [1, 1]} : vector<8x256xf32> to vector<8x128xf32>
    %c121_i32_23 = arith.constant 121 : i32
    %55 = tpu.dynamic_rotate %54 by %c121_i32_23 dim 1 : vector<8x128xf32>, i32 -> vector<8x128xf32>
    %56 = tpu.concatenate %53, %55 in 1 : vector<8x128xf32>, vector<8x128xf32> -> vector<8x256xf32>
    %c6 = arith.constant 6 : index
    %c0_24 = arith.constant 0 : index
    %57 = vector.load %arg4[%c6, %c0_24] : memref<16x256xf32, #tpu.memory_space<vmem>>, vector<1x256xf32>
    %58 = vector.broadcast %57 : vector<1x256xf32> to vector<8x256xf32>
    %59 = arith.mulf %56, %58 : vector<8x256xf32>
    %60 = vector.extract_strided_slice %11 {offsets = [0, 0], sizes = [8, 128], strides = [1, 1]} : vector<8x256xf32> to vector<8x128xf32>
    %c120_i32 = arith.constant 120 : i32
    %61 = tpu.dynamic_rotate %60 by %c120_i32 dim 1 : vector<8x128xf32>, i32 -> vector<8x128xf32>
    %62 = vector.extract_strided_slice %11 {offsets = [0, 128], sizes = [8, 128], strides = [1, 1]} : vector<8x256xf32> to vector<8x128xf32>
    %c120_i32_25 = arith.constant 120 : i32
    %63 = tpu.dynamic_rotate %62 by %c120_i32_25 dim 1 : vector<8x128xf32>, i32 -> vector<8x128xf32>
    %64 = tpu.concatenate %61, %63 in 1 : vector<8x128xf32>, vector<8x128xf32> -> vector<8x256xf32>
    %c7 = arith.constant 7 : index
    %c0_26 = arith.constant 0 : index
    %65 = vector.load %arg4[%c7, %c0_26] : memref<16x256xf32, #tpu.memory_space<vmem>>, vector<1x256xf32>
    %66 = vector.broadcast %65 : vector<1x256xf32> to vector<8x256xf32>
    %67 = arith.mulf %64, %66 : vector<8x256xf32>
    %68 = vector.extract_strided_slice %11 {offsets = [0, 0], sizes = [8, 128], strides = [1, 1]} : vector<8x256xf32> to vector<8x128xf32>
    %c119_i32 = arith.constant 119 : i32
    %69 = tpu.dynamic_rotate %68 by %c119_i32 dim 1 : vector<8x128xf32>, i32 -> vector<8x128xf32>
    %70 = vector.extract_strided_slice %11 {offsets = [0, 128], sizes = [8, 128], strides = [1, 1]} : vector<8x256xf32> to vector<8x128xf32>
    %c119_i32_27 = arith.constant 119 : i32
    %71 = tpu.dynamic_rotate %70 by %c119_i32_27 dim 1 : vector<8x128xf32>, i32 -> vector<8x128xf32>
    %72 = tpu.concatenate %69, %71 in 1 : vector<8x128xf32>, vector<8x128xf32> -> vector<8x256xf32>
    %c8_28 = arith.constant 8 : index
    %c0_29 = arith.constant 0 : index
    %73 = vector.load %arg4[%c8_28, %c0_29] : memref<16x256xf32, #tpu.memory_space<vmem>>, vector<1x256xf32>
    %74 = vector.broadcast %73 : vector<1x256xf32> to vector<8x256xf32>
    %75 = arith.mulf %72, %74 : vector<8x256xf32>
    %76 = tpu.concatenate %19, %27, %35, %43, %11, %51, %59, %67, %75 in 0 : vector<8x256xf32>, vector<8x256xf32>, vector<8x256xf32>, vector<8x256xf32>, vector<8x256xf32>, vector<8x256xf32>, vector<8x256xf32>, vector<8x256xf32>, vector<8x256xf32> -> vector<72x256xf32>
    %cst_30 = arith.constant dense<0.000000e+00> : vector<8x256xf32>
    %77 = tpu.matmul %2, %76, %cst_30 {dimension_numbers = #tpu.dot_dimension_numbers<[1], [0], [0], [1], [0, 0, 1, 1], [], []>} : vector<8x72xf32>, vector<72x256xf32>, vector<8x256xf32> -> vector<8x256xf32>
    %78 = vector.broadcast %5 : vector<8x1xf32> to vector<8x256xf32>
    %79 = arith.addf %77, %78 : vector<8x256xf32>
    %cst_31 = arith.constant 0.000000e+00 : f32
    %80 = vector.broadcast %cst_31 : f32 to vector<8x256xf32>
    %81 = arith.maximumf %79, %80 : vector<8x256xf32>
    %cst_32 = arith.constant dense<0.000000e+00> : vector<32x256xf32>
    %82 = tpu.matmul %3, %81, %cst_32 {dimension_numbers = #tpu.dot_dimension_numbers<[1], [0], [0], [1], [0, 0, 1, 1], [], []>} : vector<32x8xf32>, vector<8x256xf32>, vector<32x256xf32> -> vector<32x256xf32>
    %83 = vector.broadcast %6 : vector<32x1xf32> to vector<32x256xf32>
    %84 = arith.addf %82, %83 : vector<32x256xf32>
    %85 = arith.addf %84, %0 : vector<32x256xf32>
    %cst_33 = arith.constant 0.000000e+00 : f32
    %86 = vector.broadcast %cst_33 : f32 to vector<32x256xf32>
    %87 = arith.maximumf %85, %86 : vector<32x256xf32>
    %c0_34 = arith.constant 0 : index
    %c0_35 = arith.constant 0 : index
    %88 = vector.load %arg5[%c0_34, %c0_35] : memref<32x256xf32, #tpu.memory_space<vmem>>, vector<32x256xf32>
    tpu.vector_store %arg5[%c0_34, %c0_35], %87 {strides = array<i32>} : memref<32x256xf32, #tpu.memory_space<vmem>>, vector<32x256xf32>,
    return
  }
  func.func @transform_0(%arg0: i32) -> (i32, i32) {
    %c0_i32 = arith.constant 0 : i32
    %c0_i32_0 = arith.constant 0 : i32
    return %c0_i32, %arg0 : i32, i32
  }
  func.func @transform_1(%arg0: i32) -> (i32, i32) {
    %c0_i32 = arith.constant 0 : i32
    %c0_i32_0 = arith.constant 0 : i32
    %c0_i32_1 = arith.constant 0 : i32
    return %c0_i32, %c0_i32_0 : i32, i32
  }
  func.func @transform_2(%arg0: i32) -> (i32, i32) {
    %c0_i32 = arith.constant 0 : i32
    %c0_i32_0 = arith.constant 0 : i32
    %c0_i32_1 = arith.constant 0 : i32
    return %c0_i32, %c0_i32_0 : i32, i32
  }
  func.func @transform_3(%arg0: i32) -> (i32, i32) {
    %c0_i32 = arith.constant 0 : i32
    %c0_i32_0 = arith.constant 0 : i32
    %c0_i32_1 = arith.constant 0 : i32
    return %c0_i32, %c0_i32_0 : i32, i32
  }
  func.func @transform_4(%arg0: i32) -> (i32, i32) {
    %c0_i32 = arith.constant 0 : i32
    %c0_i32_0 = arith.constant 0 : i32
    return %c0_i32, %arg0 : i32, i32
  }
}

</mosaic_0001>

<llo_original>
// kernel: tpu_custom_call.1
$region0: #{tpu_custom_call.1}
  #allocation0 [shape = 'u32[]', space=smem, size = 0x4, offset = 0x4, fixed_abs, tag = 'smem constant byte address 0x4 - core index']
  #allocation1 [shape = 'u32[144,128]{1,0:T(1,128)}', space=vmem, size = 0x12000, scoped, tag = 'internal scratch']
  %s0 = inlined_call_operand.hbm [shape: f32[32,512], index: 0, kind: input, shape index: {}]
  %s1 = inlined_call_operand.vmem [shape: f32[48,128], index: 1, kind: input, shape index: {}]
  %s2 = inlined_call_operand.vmem [shape: f32[48,1], index: 2, kind: input, shape index: {}]
  %s3 = inlined_call_operand.hbm [shape: f32[16,256], index: 3, kind: input, shape index: {}]
  %s4 = inlined_call_operand.hbm [shape: f32[32,512], index: 4, kind: output, shape index: {}]
  %s5 = sld [smem:[#allocation0]]
  $region57: #{tpu_custom_call.1} parent=0
    _
  %s7 = ssub.s32 1, %s5
  %s8 = scalar_select 0, %s7, %s5
  $region1: #{tpu_custom_call.1} parent=0
    #allocation2 [shape = 'u8[65536]{0}', space=vmem, size = 0x10000, scoped, tag = 'input window, operand 0']
    #allocation3 [shape = 's32[2]{0}', space=sflag, size = 0x8, scoped, tag = 'scoped memory for tpu_custom_call.1']
    #allocation4 [shape = 's32[2]{0}', space=sflag, size = 0x8, scoped, tag = 'scoped memory for tpu_custom_call.1']
    #allocation5 [shape = 'u8[16384]{0}', space=vmem, size = 0x4000, scoped, tag = 'input window, operand 3, single buffered']
    #allocation6 [shape = 's32[1]{0}', space=sflag, size = 0x4, scoped, tag = 'scoped memory for tpu_custom_call.1']
    #allocation7 [shape = 'u8[65536]{0}', space=vmem, size = 0x10000, scoped, tag = 'output window, operand 0']
    %9 = vsyncpa [#allocation3], 0
    %s10 = scalar_lea.sflag [#allocation3], 1
    %11 = vsyncpa %s10, 0
    %12 = vsyncpa [#allocation6], 0
    %13 = vsyncpa [#allocation4], 0
    %s14 = scalar_lea.sflag [#allocation4], 1
    %15 = vsyncpa %s14, 0
    loop: start=0, step=1, limit=4
    $region2: #{tpu_custom_call.1} parent=1 // loop_pre_header
      _
    $region3: #{tpu_custom_call.1} parent=1 // loop_header
      %s17 = sphi 0, %s21
      %p18 = scmp.ge.s32.totalorder %s17, 4
      %s27 = sphi 0, %s29
      %s30 = sphi 0, %s27
      %s31 = sphi 0, %s30
      %s47 = sphi 0, %s31
      %s51 = sphi 0, %s51
      %s53 = sphi 0, %s51
      %s54 = sphi 0, %s53
      %s68 = sphi 0, %s54
      %s72 = sphi 0, %s72
      %s74 = sphi 0, %s72
      %s75 = sphi 0, %s74
      %s89 = sphi 0, %s75
      %s93 = sphi 0, %s93
      %s95 = sphi 0, %s93
      %s96 = sphi 0, %s95
      %s110 = sphi 0, %s96
      %s116 = sphi 0, %s118
      %s119 = sphi 0, %s116
      %s120 = sphi 0, %s119
      %s136 = sphi 0, %s120
    $region4: #{tpu_custom_call.1} parent=1 // loop_header_branch
      %20 = sbr.rel (%p18) target = $region8
    $region5: #{tpu_custom_call.1} parent=1 // loop_body
      %s22 = ssub.s32 %s17, 1
      %s23 = ssub.s32 %s17, 2
      %s24 = sadd.s32 %s17, 1
      %s25 = ssub.s32 %s17, %s24
      %p26 = scmp.eq.s32.totalorder %s25, 0
      %s28 = sadd.s32 %s27, 1
      %s29 = scalar_select %p26, %s27, %s28
      %p32 = pneg %p26
      %p33 = scmp.eq.s32.totalorder %s17, 1
      %p34 = por %p32, %p33
      %p35 = scmp.ne.s32.totalorder %s27, %s30
      %p36 = scmp.eq.s32.totalorder %s17, 0
      %p37 = por %p35, %p36
      %p38 = scmp.ne.s32.totalorder %s27, %s30
      %p39 = scmp.eq.s32.totalorder %s22, 1
      %p40 = por %p38, %p39
      %p41 = scmp.ne.s32.totalorder %s30, %s31
      %p42 = scmp.eq.s32.totalorder %s22, 0
      %p43 = por %p41, %p42
      %p44 = scmp.ne.s32.totalorder %s30, %s31
      %p45 = scmp.eq.s32.totalorder %s23, 1
      %p46 = por %p44, %p45
      %p48 = scmp.ne.s32.totalorder %s31, %s47
      %p49 = scmp.eq.s32.totalorder %s23, 0
      %p50 = por %p48, %p49
      %s52 = sadd.s32 %s51, 1
      %p55 = scmp.eq.s32.totalorder %s17, 1
      %p56 = scmp.ne.s32.totalorder %s51, %s53
      %p57 = scmp.eq.s32.totalorder %s17, 0
      %p58 = por %p56, %p57
      %p59 = scmp.ne.s32.totalorder %s51, %s53
      %p60 = scmp.eq.s32.totalorder %s22, 1
      %p61 = por %p59, %p60
      %p62 = scmp.ne.s32.totalorder %s53, %s54
      %p63 = scmp.eq.s32.totalorder %s22, 0
      %p64 = por %p62, %p63
      %p65 = scmp.ne.s32.totalorder %s53, %s54
      %p66 = scmp.eq.s32.totalorder %s23, 1
      %p67 = por %p65, %p66
      %p69 = scmp.ne.s32.totalorder %s54, %s68
      %p70 = scmp.eq.s32.totalorder %s23, 0
      %p71 = por %p69, %p70
      %s73 = sadd.s32 %s72, 1
      %p76 = scmp.eq.s32.totalorder %s17, 1
      %p77 = scmp.ne.s32.totalorder %s72, %s74
      %p78 = scmp.eq.s32.totalorder %s17, 0
      %p79 = por %p77, %p78
      %p80 = scmp.ne.s32.totalorder %s72, %s74
      %p81 = scmp.eq.s32.totalorder %s22, 1
      %p82 = por %p80, %p81
      %p83 = scmp.ne.s32.totalorder %s74, %s75
      %p84 = scmp.eq.s32.totalorder %s22, 0
      %p85 = por %p83, %p84
      %p86 = scmp.ne.s32.totalorder %s74, %s75
      %p87 = scmp.eq.s32.totalorder %s23, 1
      %p88 = por %p86, %p87
      %p90 = scmp.ne.s32.totalorder %s75, %s89
      %p91 = scmp.eq.s32.totalorder %s23, 0
      %p92 = por %p90, %p91
      %s94 = sadd.s32 %s93, 1
      %p97 = scmp.eq.s32.totalorder %s17, 1
      %p98 = scmp.ne.s32.totalorder %s93, %s95
      %p99 = scmp.eq.s32.totalorder %s17, 0
      %p100 = por %p98, %p99
      %p101 = scmp.ne.s32.totalorder %s93, %s95
      %p102 = scmp.eq.s32.totalorder %s22, 1
      %p103 = por %p101, %p102
      %p104 = scmp.ne.s32.totalorder %s95, %s96
      %p105 = scmp.eq.s32.totalorder %s22, 0
      %p106 = por %p104, %p105
      %p107 = scmp.ne.s32.totalorder %s95, %s96
      %p108 = scmp.eq.s32.totalorder %s23, 1
      %p109 = por %p107, %p108
      %p111 = scmp.ne.s32.totalorder %s96, %s110
      %p112 = scmp.eq.s32.totalorder %s23, 0
      %p113 = por %p111, %p112
      %s114 = ssub.s32 %s17, %s24
      %p115 = scmp.eq.s32.totalorder %s114, 0
      %s117 = sadd.s32 %s116, 1
      %s118 = scalar_select %p115, %s116, %s117
      %p121 = pneg %p115
      %p122 = scmp.eq.s32.totalorder %s17, 1
      %p123 = por %p121, %p122
      %p124 = scmp.ne.s32.totalorder %s116, %s119
      %p125 = scmp.eq.s32.totalorder %s17, 0
      %p126 = por %p124, %p125
      %p127 = scmp.ne.s32.totalorder %s116, %s119
      %p128 = scmp.eq.s32.totalorder %s22, 1
      %p129 = por %p127, %p128
      %p130 = scmp.ne.s32.totalorder %s119, %s120
      %p131 = scmp.eq.s32.totalorder %s22, 0
      %p132 = por %p130, %p131
      %p133 = scmp.ne.s32.totalorder %s119, %s120
      %p134 = scmp.eq.s32.totalorder %s23, 1
      %p135 = por %p133, %p134
      %p137 = scmp.ne.s32.totalorder %s120, %s136
      %p138 = scmp.eq.s32.totalorder %s23, 0
      %p139 = por %p137, %p138
      %p140 = scmp.le.s32.totalorder 1, %s17
      %p141 = scmp.lt.s32.totalorder %s17, 3
      %p142 = pnand %p140, %p141
      %p143 = pneg %p142
      // Predicated region
      $region9: #{tpu_custom_call.1} parent=5 // pred_check
        _
      $region10: #{tpu_custom_call.1} parent=5 // pred_check_branch
        %145 = sbr.rel (%p142) target = $region12
      $region11: #{tpu_custom_call.1} parent=5 // pred_region
        %s146 = ssub.s32 %s17, 1
        // Predicated region
        $region13: #{tpu_custom_call.1} parent=11 // pred_check
          %p147 = pneg %p64
        $region14: #{tpu_custom_call.1} parent=11 // pred_check_branch
          %149 = sbr.rel (%p147) target = $region16
        $region15: #{tpu_custom_call.1} parent=11 // pred_region
          _
        $region16: #{tpu_custom_call.1} parent=11 // pred_fallthru
          _
        // Predicated region
        $region17: #{tpu_custom_call.1} parent=11 // pred_check
          %p150 = pneg %p85
        $region18: #{tpu_custom_call.1} parent=11 // pred_check_branch
          %152 = sbr.rel (%p150) target = $region20
        $region19: #{tpu_custom_call.1} parent=11 // pred_region
          _
        $region20: #{tpu_custom_call.1} parent=11 // pred_fallthru
          _
        // Predicated region
        $region21: #{tpu_custom_call.1} parent=11 // pred_check
          %p153 = pneg %p106
        $region22: #{tpu_custom_call.1} parent=11 // pred_check_branch
          %155 = sbr.rel (%p153) target = $region24
        $region23: #{tpu_custom_call.1} parent=11 // pred_region
          %s157 = ssub.s32 512, 512
          %158 = vsyncadd [#allocation6], %s157
          %s159 = sshll.u32 [#allocation5], 4
          %s160 = int_to_ptr.vmem [resolvable:$true] %s159
          %165 = dma.hbm_to_vmem [thread:$0]  %s3, 512, %s160, [#allocation6], 256, 256, 16
        $region24: #{tpu_custom_call.1} parent=11 // pred_fallthru
          _
      $region12: #{tpu_custom_call.1} parent=5 // pred_fallthru
        _
      %p166 = scmp.lt.s32.totalorder %s17, 2
      // Predicated region
      $region25: #{tpu_custom_call.1} parent=5 // pred_check
        %p167 = pneg %p166
      $region26: #{tpu_custom_call.1} parent=5 // pred_check_branch
        %169 = sbr.rel (%p167) target = $region28
      $region27: #{tpu_custom_call.1} parent=5 // pred_region
        // Predicated region
        $region29: #{tpu_custom_call.1} parent=27 // pred_check
          %p170 = pneg %p37
        $region30: #{tpu_custom_call.1} parent=27 // pred_check_branch
          %172 = sbr.rel (%p170) target = $region32
        $region31: #{tpu_custom_call.1} parent=27 // pred_region
          %s173 = sand.u32 %s27, 1
          %s174 = scalar_lea.sflag [#allocation3], %s173
          %s175 = sand.u32 %s27, 1
          %s176 = smul.addr %s175, 64
          %s177 = scalar_lea.vmem [#allocation2], %s176
          %s178 = smul.u32 2, %s17
          %s180 = ssub.s32 1024, 1024
          %181 = vsyncadd %s174, %s180
          %s182 = smul.addr %s178, 128
          %s183 = scalar_lea.hbm %s0, %s182
          %s184 = sshll.u32 %s177, 4
          %s185 = int_to_ptr.vmem [resolvable:$true] %s184
          %190 = dma.hbm_to_vmem [thread:$0]  %s183, 1024, %s185, %s174, 512, 256, 16
        $region32: #{tpu_custom_call.1} parent=27 // pred_fallthru
          _
      $region28: #{tpu_custom_call.1} parent=5 // pred_fallthru
        _
      %p191 = scmp.le.s32.totalorder 1, %s17
      %p192 = scmp.lt.s32.totalorder %s17, 3
      %p193 = pnand %p191, %p192
      %p194 = pneg %p193
      // Predicated region
      $region33: #{tpu_custom_call.1} parent=5 // pred_check
        _
      $region34: #{tpu_custom_call.1} parent=5 // pred_check_branch
        %196 = sbr.rel (%p193) target = $region36
      $region35: #{tpu_custom_call.1} parent=5 // pred_region
        %s197 = ssub.s32 %s17, 1
        %s198 = sand.u32 %s30, 1
        %s199 = scalar_lea.sflag [#allocation3], %s198
        %s200 = sand.u32 %s30, 1
        %s201 = smul.addr %s200, 64
        %s202 = scalar_lea.vmem [#allocation2], %s201
        // Predicated region
        $region37: #{tpu_custom_call.1} parent=35 // pred_check
          %p203 = pneg %p43
        $region38: #{tpu_custom_call.1} parent=35 // pred_check_branch
          %205 = sbr.rel (%p203) target = $region40
        $region39: #{tpu_custom_call.1} parent=35 // pred_region
          %206 = dma.done %s199, 1024
        $region40: #{tpu_custom_call.1} parent=35 // pred_fallthru
          _
        // Predicated region
        $region41: #{tpu_custom_call.1} parent=35 // pred_check
          %p207 = pneg %p106
        $region42: #{tpu_custom_call.1} parent=35 // pred_check_branch
          %209 = sbr.rel (%p207) target = $region44
        $region43: #{tpu_custom_call.1} parent=35 // pred_region
          %210 = dma.done [#allocation6], 512
        $region44: #{tpu_custom_call.1} parent=35 // pred_fallthru
          _
        %s211 = sand.u32 %s30, 1
        %s212 = scalar_lea.sflag [#allocation3], %s211
        %s213 = sand.u32 %s30, 1
        %s214 = smul.addr %s213, 64
        %s215 = scalar_lea.vmem [#allocation2], %s214
        %p216 = pneg %p43
        %p217 = pneg %p40
        %p218 = pneg %p64
        %p219 = pneg %p61
        %p220 = pneg %p85
        %p221 = pneg %p82
        %p222 = pneg %p106
        %p223 = pneg %p103
        %p224 = pneg %p132
        %p225 = pneg %p129
        %s226 = sand.u32 %s119, 1
        %s227 = scalar_lea.sflag [#allocation4], %s226
        %s228 = sand.u32 %s119, 1
        %s229 = smul.addr %s228, 64
        %s230 = scalar_lea.vmem [#allocation7], %s229
        %s231 = smul.u32 2, %s22
        %s232 = smul.u32 2, %s22
        %v233 = vld [vmem:[%s202] sm:$0xff]
        %v234 = vld [vmem:[%s202 + $0x8] sm:$0xff]
        %v235 = vld [vmem:[%s202 + $0x10] sm:$0xff]
        %v236 = vld [vmem:[%s202 + $0x18] sm:$0xff]
        %v237 = vld [vmem:[%s202 + $0x20] sm:$0xff]
        %v238 = vld [vmem:[%s202 + $0x28] sm:$0xff]
        %v239 = vld [vmem:[%s202 + $0x30] sm:$0xff]
        %v240 = vld [vmem:[%s202 + $0x38] sm:$0xff]
        %v241 = vld [vmem:[%s1] sm:$0xff]
        %v242 = vld [vmem:[%s1 + $0x8] sm:$0xff]
        %v243 = vld [vmem:[%s1 + $0x10] sm:$0xff]
        %v244 = vld [vmem:[%s1 + $0x18] sm:$0xff]
        %v245 = vld [vmem:[%s1 + $0x20] sm:$0xff]
        %v246 = vld [vmem:[%s1 + $0x28] sm:$0xff]
        %v247 = vld [vmem:[%s2] sm:$0xff]
        %v248 = vld [vmem:[%s2 + $0x8] sm:$0xff]
        %v249 = vld [vmem:[%s2 + $0x10] sm:$0xff]
        %v250 = vld [vmem:[%s2 + $0x18] sm:$0xff]
        %v251 = vld [vmem:[%s2 + $0x20] sm:$0xff]
        %v252 = vld [vmem:[%s2 + $0x28] sm:$0xff]
        %254 = vset.pattern.permute.xlu0 0
        %255 = vperm.xlu0 %254, %v247
        %v256 = vpop.permute.xlu0 %255
        %vm258 = vcmask 261120
        %v260 = vsel %vm258, %v241, 0
        %262 = vmatprep.subr.mxu0 %v234
        %263 = vmatpush1.msra.mxu0 %v233
        %264 = vmatprep.subr.mxu0 %v236
        %265 = vmatpush1.msra.mxu0 %v235
        %266 = vmatprep.subr.mxu0 %v238
        %267 = vmatpush1.msra.mxu0 %v237
        %268 = vmatprep.subr.mxu0 %v240
        %269 = vmatpush1.msra.mxu0 %v239
        %270 = vmatprep.subr.mxu0 0.0
        %271 = vmatpush1.msra.mxu0 0.0
        %272 = vmatprep.subr.mxu0 0.0
        %273 = vmatpush1.msra.mxu0 0.0
        %274 = vmatprep.subr.mxu0 0.0
        %275 = vmatpush1.msra.mxu0 0.0
        %276 = vmatprep.subr.mxu0 0.0
        %277 = vmatpush1.msra.mxu0 0.0
        %278 = vmatprep.subr.mxu0 0.0
        %279 = vmatpush1.msra.mxu0 0.0
        %280 = vmatprep.subr.mxu0 0.0
        %281 = vmatpush1.msra.mxu0 0.0
        %282 = vmatprep.subr.mxu0 0.0
        %283 = vmatpush1.msra.mxu0 0.0
        %284 = vmatprep.subr.mxu0 0.0
        %285 = vmatpush1.msra.mxu0 0.0
        %286 = vmatprep.subr.mxu0 0.0
        %287 = vmatpush1.msra.mxu0 0.0
        %288 = vmatprep.subr.mxu0 0.0
        %289 = vmatpush1.msra.mxu0 0.0
        %290 = vmatprep.subr.mxu0 0.0
        %291 = vmatpush1.msra.mxu0 0.0
        %292 = vmatprep.subr.mxu0 0.0
        %293 = vmatpush1.msra.mxu0 0.0
        %294 = vmatprep.subr.mxu0 0.0
        %295 = vmatpush1.msra.mxu0 0.0
        %296 = vmatprep.subr.mxu0 0.0
        %297 = vmatpush1.msra.mxu0 0.0
        %298 = vmatprep.subr.mxu0 0.0
        %299 = vmatpush1.msra.mxu0 0.0
        %300 = vmatprep.subr.mxu0 0.0
        %301 = vmatpush1.msra.mxu0 0.0
        %302 = vmatprep.subr.mxu0 0.0
        %303 = vmatpush1.msra.mxu0 0.0
        %304 = vmatprep.subr.mxu0 0.0
        %305 = vmatpush1.msra.mxu0 0.0
        %306 = vmatprep.subr.mxu0 0.0
        %307 = vmatpush1.msra.mxu0 0.0
        %308 = vmatprep.subr.mxu0 0.0
        %309 = vmatpush1.msra.mxu0 0.0
        %310 = vmatprep.subr.mxu0 0.0
        %311 = vmatpush1.msra.mxu0 0.0
        %312 = vmatprep.subr.mxu0 0.0
        %313 = vmatpush1.msra.mxu0 0.0
        %314 = vmatprep.subr.mxu0 0.0
        %315 = vmatpush1.msra.mxu0 0.0
        %316 = vmatprep.subr.mxu0 0.0
        %317 = vmatpush1.msra.mxu0 0.0
        %318 = vmatprep.subr.mxu0 0.0
        %319 = vmatpush1.msra.mxu0 0.0
        %320 = vmatprep.subr.mxu0 0.0
        %321 = vmatpush1.msra.mxu0 0.0
        %322 = vmatprep.subr.mxu0 0.0
        %323 = vmatpush1.msra.mxu0 0.0
        %324 = vmatprep.subr.mxu0 0.0
        %325 = vmatpush1.msra.mxu0 0.0
        %326 = vmatprep.mubr.f32.mxu0 0.0
        %327 = vmatmul.mubr.f32.gmra.mrb[0].mxu0 %v260
        %v328 = vpop.f32.mrb[0].mxu0
        %v329 = vadd.f32 %v256, %v328
        %v330 = vpop.f32.mrb[0].mxu0
        %v331 = vadd.f32 %v256, %v330
        %332 = vdwg.mxu0
        %v333 = vmax.f32 %v329, 0.0
        %v334 = vmax.f32 %v331, 0.0
        %335 = vrot.lane.b32.xlu0 %v333, 9
        %v336 = vpop.permute.xlu0 %335
        %337 = vrot.lane.b32.xlu0 %v334, 9
        %v338 = vpop.permute.xlu0 %337
        %v339 = vld [vmem:[#allocation5] ss:$8 sm:$0x3]
        %v341 = vlaneseq
        %v342 = vshrl.u32 %v341, 7
        %v343 = vsub.s32 0, %v342
        %v344 = vrot.slane %v339, %v343
        %v345 = vlaneseq
        %v346 = vshrl.u32 %v345, 7
        %v347 = vsub.s32 1, %v346
        %v348 = vrot.slane %v339, %v347
        %v351 = vmul.f32 %v336, %v344
        %v352 = vmul.f32 %v338, %v348
        %353 = vrot.lane.b32.xlu0 %v333, 8
        %v354 = vpop.permute.xlu0 %353
        %355 = vrot.lane.b32.xlu0 %v334, 8
        %v356 = vpop.permute.xlu0 %355
        %s357 = scalar_lea.vmem [#allocation5], 1
        %v358 = vld [vmem:[%s357] ss:$8 sm:$0x3]
        %v360 = vlaneseq
        %v361 = vshrl.u32 %v360, 7
        %v362 = vsub.s32 0, %v361
        %v363 = vrot.slane %v358, %v362
        %v364 = vlaneseq
        %v365 = vshrl.u32 %v364, 7
        %v366 = vsub.s32 1, %v365
        %v367 = vrot.slane %v358, %v366
        %v370 = vmul.f32 %v354, %v363
        %v371 = vmul.f32 %v356, %v367
        %372 = vrot.lane.b32.xlu0 %v333, 7
        %v373 = vpop.permute.xlu0 %372
        %374 = vrot.lane.b32.xlu0 %v334, 7
        %v375 = vpop.permute.xlu0 %374
        %s376 = scalar_lea.vmem [#allocation5], 2
        %v377 = vld [vmem:[%s376] ss:$8 sm:$0x3]
        %v379 = vlaneseq
        %v380 = vshrl.u32 %v379, 7
        %v381 = vsub.s32 0, %v380
        %v382 = vrot.slane %v377, %v381
        %v383 = vlaneseq
        %v384 = vshrl.u32 %v383, 7
        %v385 = vsub.s32 1, %v384
        %v386 = vrot.slane %v377, %v385
        %v389 = vmul.f32 %v373, %v382
        %v390 = vmul.f32 %v375, %v386
        %391 = vrot.lane.b32.xlu0 %v333, 1
        %v392 = vpop.permute.xlu0 %391
        %393 = vrot.lane.b32.xlu0 %v334, 1
        %v394 = vpop.permute.xlu0 %393
        %s395 = scalar_lea.vmem [#allocation5], 3
        %v396 = vld [vmem:[%s395] ss:$8 sm:$0x3]
        %v398 = vlaneseq
        %v399 = vshrl.u32 %v398, 7
        %v400 = vsub.s32 0, %v399
        %v401 = vrot.slane %v396, %v400
        %v402 = vlaneseq
        %v403 = vshrl.u32 %v402, 7
        %v404 = vsub.s32 1, %v403
        %v405 = vrot.slane %v396, %v404
        %v408 = vmul.f32 %v392, %v401
        %v409 = vmul.f32 %v394, %v405
        %410 = vrot.lane.b32.xlu0 %v333, 127
        %v411 = vpop.permute.xlu0 %410
        %412 = vrot.lane.b32.xlu0 %v334, 127
        %v413 = vpop.permute.xlu0 %412
        %s414 = scalar_lea.vmem [#allocation5], 5
        %v415 = vld [vmem:[%s414] ss:$8 sm:$0x3]
        %v417 = vlaneseq
        %v418 = vshrl.u32 %v417, 7
        %v419 = vsub.s32 0, %v418
        %v420 = vrot.slane %v415, %v419
        %v421 = vlaneseq
        %v422 = vshrl.u32 %v421, 7
        %v423 = vsub.s32 1, %v422
        %v424 = vrot.slane %v415, %v423
        %v427 = vmul.f32 %v411, %v420
        %v428 = vmul.f32 %v413, %v424
        %429 = vrot.lane.b32.xlu0 %v333, 121
        %v430 = vpop.permute.xlu0 %429
        %431 = vrot.lane.b32.xlu0 %v334, 121
        %v432 = vpop.permute.xlu0 %431
        %s433 = scalar_lea.vmem [#allocation5], 6
        %v434 = vld [vmem:[%s433] ss:$8 sm:$0x3]
        %v436 = vlaneseq
        %v437 = vshrl.u32 %v436, 7
        %v438 = vsub.s32 0, %v437
        %v439 = vrot.slane %v434, %v438
        %v440 = vlaneseq
        %v441 = vshrl.u32 %v440, 7
        %v442 = vsub.s32 1, %v441
        %v443 = vrot.slane %v434, %v442
        %v446 = vmul.f32 %v430, %v439
        %v447 = vmul.f32 %v432, %v443
        %448 = vrot.lane.b32.xlu0 %v333, 120
        %v449 = vpop.permute.xlu0 %448
        %450 = vrot.lane.b32.xlu0 %v334, 120
        %v451 = vpop.permute.xlu0 %450
        %s452 = scalar_lea.vmem [#allocation5], 7
        %v453 = vld [vmem:[%s452] ss:$8 sm:$0x3]
        %v455 = vlaneseq
        %v456 = vshrl.u32 %v455, 7
        %v457 = vsub.s32 0, %v456
        %v458 = vrot.slane %v453, %v457
        %v459 = vlaneseq
        %v460 = vshrl.u32 %v459, 7
        %v461 = vsub.s32 1, %v460
        %v462 = vrot.slane %v453, %v461
        %v465 = vmul.f32 %v449, %v458
        %v466 = vmul.f32 %v451, %v462
        %467 = vrot.lane.b32.xlu0 %v333, 119
        %v468 = vpop.permute.xlu0 %467
        %469 = vrot.lane.b32.xlu0 %v334, 119
        %v470 = vpop.permute.xlu0 %469
        %s471 = scalar_lea.vmem [#allocation5], 16
        %v472 = vld [vmem:[%s471] ss:$8 sm:$0x3]
        %v474 = vlaneseq
        %v475 = vshrl.u32 %v474, 7
        %v476 = vsub.s32 0, %v475
        %v477 = vrot.slane %v472, %v476
        %v478 = vlaneseq
        %v479 = vshrl.u32 %v478, 7
        %v480 = vsub.s32 1, %v479
        %v481 = vrot.slane %v472, %v480
        %v484 = vmul.f32 %v468, %v477
        %v485 = vmul.f32 %v470, %v481
        %487 = vset.pattern.permute.xlu0 0
        %488 = vperm.xlu0 %487, %v248
        %v489 = vpop.permute.xlu0 %488
        %vm491 = vcmask 588800
        %v493 = vsel %vm491, %v242, 0
        %495 = vmatprep.subr.mxu0 %v352
        %496 = vmatpush1.msra.mxu0 %v351
        %497 = vmatprep.subr.mxu0 %v371
        %498 = vmatpush1.msra.mxu0 %v370
        %499 = vmatprep.subr.mxu0 %v390
        %500 = vmatpush1.msra.mxu0 %v389
        %501 = vmatprep.subr.mxu0 %v409
        %502 = vmatpush1.msra.mxu0 %v408
        %503 = vmatprep.subr.mxu0 %v334
        %504 = vmatpush1.msra.mxu0 %v333
        %505 = vmatprep.subr.mxu0 %v428
        %506 = vmatpush1.msra.mxu0 %v427
        %507 = vmatprep.subr.mxu0 %v447
        %508 = vmatpush1.msra.mxu0 %v446
        %509 = vmatprep.subr.mxu0 %v466
        %510 = vmatpush1.msra.mxu0 %v465
        %511 = vmatprep.subr.mxu0 %v485
        %512 = vmatpush1.msra.mxu0 %v484
        %513 = vmatprep.subr.mxu0 0.0
        %514 = vmatpush1.msra.mxu0 0.0
        %515 = vmatprep.subr.mxu0 0.0
        %516 = vmatpush1.msra.mxu0 0.0
        %517 = vmatprep.subr.mxu0 0.0
        %518 = vmatpush1.msra.mxu0 0.0
        %519 = vmatprep.subr.mxu0 0.0
        %520 = vmatpush1.msra.mxu0 0.0
        %521 = vmatprep.subr.mxu0 0.0
        %522 = vmatpush1.msra.mxu0 0.0
        %523 = vmatprep.subr.mxu0 0.0
        %524 = vmatpush1.msra.mxu0 0.0
        %525 = vmatprep.subr.mxu0 0.0
        %526 = vmatpush1.msra.mxu0 0.0
        %527 = vmatprep.subr.mxu0 0.0
        %528 = vmatpush1.msra.mxu0 0.0
        %529 = vmatprep.subr.mxu0 0.0
        %530 = vmatpush1.msra.mxu0 0.0
        %531 = vmatprep.subr.mxu0 0.0
        %532 = vmatpush1.msra.mxu0 0.0
        %533 = vmatprep.subr.mxu0 0.0
        %534 = vmatpush1.msra.mxu0 0.0
        %535 = vmatprep.subr.mxu0 0.0
        %536 = vmatpush1.msra.mxu0 0.0
        %537 = vmatprep.subr.mxu0 0.0
        %538 = vmatpush1.msra.mxu0 0.0
        %539 = vmatprep.subr.mxu0 0.0
        %540 = vmatpush1.msra.mxu0 0.0
        %541 = vmatprep.subr.mxu0 0.0
        %542 = vmatpush1.msra.mxu0 0.0
        %543 = vmatprep.subr.mxu0 0.0
        %544 = vmatpush1.msra.mxu0 0.0
        %545 = vmatprep.subr.mxu0 0.0
        %546 = vmatpush1.msra.mxu0 0.0
        %547 = vmatprep.subr.mxu0 0.0
        %548 = vmatpush1.msra.mxu0 0.0
        %549 = vmatprep.subr.mxu0 0.0
        %550 = vmatpush1.msra.mxu0 0.0
        %551 = vmatprep.subr.mxu0 0.0
        %552 = vmatpush1.msra.mxu0 0.0
        %553 = vmatprep.subr.mxu0 0.0
        %554 = vmatpush1.msra.mxu0 0.0
        %555 = vmatprep.subr.mxu0 0.0
        %556 = vmatpush1.msra.mxu0 0.0
        %557 = vmatprep.subr.mxu0 0.0
        %558 = vmatpush1.msra.mxu0 0.0
        %559 = vmatprep.mubr.f32.mxu0 0.0
        %560 = vmatmul.mubr.f32.gmra.mrb[0].mxu0 %v493
        %v561 = vpop.f32.mrb[0].mxu0
        %v562 = vadd.f32 %v489, %v561
        %v563 = vpop.f32.mrb[0].mxu0
        %v564 = vadd.f32 %v489, %v563
        %565 = vdwg.mxu0
        %v566 = vmax.f32 %v562, 0.0
        %v567 = vmax.f32 %v564, 0.0
        %569 = vset.pattern.permute.xlu0 0
        %570 = vperm.xlu0 %569, %v249
        %v571 = vpop.permute.xlu0 %570
        %574 = vset.pattern.permute.xlu0 0
        %575 = vperm.xlu0 %574, %v250
        %v576 = vpop.permute.xlu0 %575
        %579 = vset.pattern.permute.xlu0 0
        %580 = vperm.xlu0 %579, %v251
        %v581 = vpop.permute.xlu0 %580
        %584 = vset.pattern.permute.xlu0 0
        %585 = vperm.xlu0 %584, %v252
        %v586 = vpop.permute.xlu0 %585
        %vm588 = vcmask 64512
        %v590 = vsel %vm588, %v243, 0
        %v593 = vsel %vm588, %v244, 0
        %v596 = vsel %vm588, %v245, 0
        %v599 = vsel %vm588, %v246, 0
        %601 = vmatprep.subr.mxu0 %v567
        %602 = vmatpush1.msra.mxu0 %v566
        %603 = vmatprep.subr.mxu0 0.0
        %604 = vmatpush1.msra.mxu0 0.0
        %605 = vmatprep.subr.mxu0 0.0
        %606 = vmatpush1.msra.mxu0 0.0
        %607 = vmatprep.subr.mxu0 0.0
        %608 = vmatpush1.msra.mxu0 0.0
        %609 = vmatprep.subr.mxu0 0.0
        %610 = vmatpush1.msra.mxu0 0.0
        %611 = vmatprep.subr.mxu0 0.0
        %612 = vmatpush1.msra.mxu0 0.0
        %613 = vmatprep.subr.mxu0 0.0
        %614 = vmatpush1.msra.mxu0 0.0
        %615 = vmatprep.subr.mxu0 0.0
        %616 = vmatpush1.msra.mxu0 0.0
        %617 = vmatprep.subr.mxu0 0.0
        %618 = vmatpush1.msra.mxu0 0.0
        %619 = vmatprep.subr.mxu0 0.0
        %620 = vmatpush1.msra.mxu0 0.0
        %621 = vmatprep.subr.mxu0 0.0
        %622 = vmatpush1.msra.mxu0 0.0
        %623 = vmatprep.subr.mxu0 0.0
        %624 = vmatpush1.msra.mxu0 0.0
        %625 = vmatprep.subr.mxu0 0.0
        %626 = vmatpush1.msra.mxu0 0.0
        %627 = vmatprep.subr.mxu0 0.0
        %628 = vmatpush1.msra.mxu0 0.0
        %629 = vmatprep.subr.mxu0 0.0
        %630 = vmatpush1.msra.mxu0 0.0
        %631 = vmatprep.subr.mxu0 0.0
        %632 = vmatpush1.msra.mxu0 0.0
        %633 = vmatprep.subr.mxu0 0.0
        %634 = vmatpush1.msra.mxu0 0.0
        %635 = vmatprep.subr.mxu0 0.0
        %636 = vmatpush1.msra.mxu0 0.0
        %637 = vmatprep.subr.mxu0 0.0
        %638 = vmatpush1.msra.mxu0 0.0
        %639 = vmatprep.subr.mxu0 0.0
        %640 = vmatpush1.msra.mxu0 0.0
        %641 = vmatprep.subr.mxu0 0.0
        %642 = vmatpush1.msra.mxu0 0.0
        %643 = vmatprep.subr.mxu0 0.0
        %644 = vmatpush1.msra.mxu0 0.0
        %645 = vmatprep.subr.mxu0 0.0
        %646 = vmatpush1.msra.mxu0 0.0
        %647 = vmatprep.subr.mxu0 0.0
        %648 = vmatpush1.msra.mxu0 0.0
        %649 = vmatprep.subr.mxu0 0.0
        %650 = vmatpush1.msra.mxu0 0.0
        %651 = vmatprep.subr.mxu0 0.0
        %652 = vmatpush1.msra.mxu0 0.0
        %653 = vmatprep.subr.mxu0 0.0
        %654 = vmatpush1.msra.mxu0 0.0
        %655 = vmatprep.subr.mxu0 0.0
        %656 = vmatpush1.msra.mxu0 0.0
        %657 = vmatprep.subr.mxu0 0.0
        %658 = vmatpush1.msra.mxu0 0.0
        %659 = vmatprep.subr.mxu0 0.0
        %660 = vmatpush1.msra.mxu0 0.0
        %661 = vmatprep.subr.mxu0 0.0
        %662 = vmatpush1.msra.mxu0 0.0
        %663 = vmatprep.subr.mxu0 0.0
        %664 = vmatpush1.msra.mxu0 0.0
        %665 = vmatprep.mubr.f32.mxu0 0.0
        %666 = vmatmul.mubr.f32.gmra.mrb[0].mxu0 %v590
        %v667 = vpop.f32.mrb[0].mxu0
        %v668 = vadd.f32 %v571, %v667
        %v669 = vpop.f32.mrb[0].mxu0
        %v670 = vadd.f32 %v571, %v669
        %671 = vmatprep.mubr.f32.mxu0 0.0
        %672 = vmatmul.mubr.f32.gmra.mrb[0].mxu0 %v593
        %v673 = vpop.f32.mrb[0].mxu0
        %v674 = vadd.f32 %v576, %v673
        %v675 = vpop.f32.mrb[0].mxu0
        %v676 = vadd.f32 %v576, %v675
        %677 = vmatprep.mubr.f32.mxu0 0.0
        %678 = vmatmul.mubr.f32.gmra.mrb[0].mxu0 %v596
        %v679 = vpop.f32.mrb[0].mxu0
        %v680 = vadd.f32 %v581, %v679
        %v681 = vpop.f32.mrb[0].mxu0
        %v682 = vadd.f32 %v581, %v681
        %683 = vmatprep.mubr.f32.mxu0 0.0
        %684 = vmatmul.mubr.f32.gmra.mrb[0].mxu0 %v599
        %v685 = vpop.f32.mrb[0].mxu0
        %v686 = vadd.f32 %v586, %v685
        %v687 = vpop.f32.mrb[0].mxu0
        %v688 = vadd.f32 %v586, %v687
        %689 = vdwg.mxu0
        %v690 = vadd.f32 %v668, %v233
        %v691 = vadd.f32 %v670, %v234
        %v692 = vadd.f32 %v674, %v235
        %v693 = vadd.f32 %v676, %v236
        %v694 = vadd.f32 %v680, %v237
        %v695 = vadd.f32 %v682, %v238
        %v696 = vadd.f32 %v686, %v239
        %v697 = vadd.f32 %v688, %v240
        %v698 = vmax.f32 %v690, 0.0
        %v699 = vmax.f32 %v691, 0.0
        %v700 = vmax.f32 %v692, 0.0
        %v701 = vmax.f32 %v693, 0.0
        %v702 = vmax.f32 %v694, 0.0
        %v703 = vmax.f32 %v695, 0.0
        %v704 = vmax.f32 %v696, 0.0
        %v705 = vmax.f32 %v697, 0.0
        %706 = vst [vmem:[%s230] sm:$0xff] %v698
        %707 = vst [vmem:[%s230 + $0x8] sm:$0xff] %v699
        %708 = vst [vmem:[%s230 + $0x10] sm:$0xff] %v700
        %709 = vst [vmem:[%s230 + $0x18] sm:$0xff] %v701
        %710 = vst [vmem:[%s230 + $0x20] sm:$0xff] %v702
        %711 = vst [vmem:[%s230 + $0x28] sm:$0xff] %v703
        %712 = vst [vmem:[%s230 + $0x30] sm:$0xff] %v704
        %713 = vst [vmem:[%s230 + $0x38] sm:$0xff] %v705
        %s714 = sand.u32 %s119, 1
        %s715 = scalar_lea.sflag [#allocation4], %s714
        %s716 = sand.u32 %s119, 1
        %s717 = smul.addr %s716, 64
        %s718 = scalar_lea.vmem [#allocation7], %s717
        // Predicated region
        $region45: #{tpu_custom_call.1} parent=35 // pred_check
          %p719 = pneg %p129
        $region46: #{tpu_custom_call.1} parent=35 // pred_check_branch
          %721 = sbr.rel (%p719) target = $region48
        $region47: #{tpu_custom_call.1} parent=35 // pred_region
          %s722 = smul.u32 2, %s22
          %s724 = ssub.s32 1024, 1024
          %725 = vsyncadd %s715, %s724
          %s726 = smul.addr %s722, 128
          %s727 = scalar_lea.hbm %s4, %s726
          %s728 = sshll.u32 %s718, 4
          %s729 = int_to_ptr.vmem [resolvable:$true] %s728
          %734 = dma.vmem_to_hbm [thread:$0]  %s729, 1024, %s727, %s715, 256, 512, 16
        $region48: #{tpu_custom_call.1} parent=35 // pred_fallthru
          _
      $region36: #{tpu_custom_call.1} parent=5 // pred_fallthru
        _
      %p735 = scmp.le.s32.totalorder 2, %s17
      // Predicated region
      $region49: #{tpu_custom_call.1} parent=5 // pred_check
        %p736 = pneg %p735
      $region50: #{tpu_custom_call.1} parent=5 // pred_check_branch
        %738 = sbr.rel (%p736) target = $region52
      $region51: #{tpu_custom_call.1} parent=5 // pred_region
        %s739 = ssub.s32 %s17, 2
        // Predicated region
        $region53: #{tpu_custom_call.1} parent=51 // pred_check
          %p740 = pneg %p135
        $region54: #{tpu_custom_call.1} parent=51 // pred_check_branch
          %742 = sbr.rel (%p740) target = $region56
        $region55: #{tpu_custom_call.1} parent=51 // pred_region
          %s743 = sand.u32 %s120, 1
          %s744 = scalar_lea.sflag [#allocation4], %s743
          %s745 = sand.u32 %s120, 1
          %s746 = smul.addr %s745, 64
          %s747 = scalar_lea.vmem [#allocation7], %s746
          %748 = dma.done %s744, 1024
        $region56: #{tpu_custom_call.1} parent=51 // pred_fallthru
          _
      $region52: #{tpu_custom_call.1} parent=5 // pred_fallthru
        _
    $region6: #{tpu_custom_call.1} parent=1 // loop_footer
      %s21 = sadd.s32 1, %s17
    $region7: #{tpu_custom_call.1} parent=1 // loop_footer_branch
      %16 = sbr.rel target = $region3
    $region8: #{tpu_custom_call.1} parent=1 // loop_exit
      _
    %749 = vsyncpa [#allocation3], 1
    %s750 = scalar_lea.sflag [#allocation3], 1
    %751 = vsyncpa %s750, 1
    %752 = vsyncpa [#allocation6], 1
    %753 = vsyncpa [#allocation4], 1
    %s754 = scalar_lea.sflag [#allocation4], 1
    %755 = vsyncpa %s754, 1

</llo_original>
